<compile_context>
chip_gen: v6e
topology: v6e:2x2x1
jax: 0.10.0
libtpu: 0.0.40
codegen_flags: <defaults>
</compile_context>

<pallas_src>
import jax
import jax.numpy as jnp
from jax.experimental import pallas as pl
from jax.experimental.pallas import tpu as pltpu


def critic_kernel(x_ref, w1_ref, w2_ref, w3_ref, b_ref, out_ref):
    n_hidden = w1_ref.shape[1]
    n_actions = w3_ref.shape[1]

    x = x_ref[...]          # already f32; no cast needed
    b = b_ref[...]          # single full-tile load of all three biases

    # hidden layer 1: relu(x @ W1 + b1)
    h = jnp.dot(x, w1_ref[...], preferred_element_type=jnp.float32)
    h = jnp.maximum(h + b[0:1, :n_hidden], 0.0)

    # hidden layer 2: relu(h @ W2 + b2)
    h = jnp.dot(h, w2_ref[...], preferred_element_type=jnp.float32)
    h = jnp.maximum(h + b[1:2, :n_hidden], 0.0)

    # output head: value = h @ W3 + b3  (written at its natural width)
    v = jnp.dot(h, w3_ref[...], preferred_element_type=jnp.float32)
    out_ref[...] = v + b[2:3, :n_actions]


def pack_critic_params(params):
    """One-time packing: all three biases go into a single [3, width] f32
    buffer (one operand, one DMA, one VMEM tile). Weights stay unpadded."""
    w1, b1, w2, b2, w3, b3 = params
    n_hidden = w1.shape[1]
    n_actions = w3.shape[1]
    width = max(n_hidden, n_actions)

    b_packed = jnp.zeros((3, width), jnp.float32)
    b_packed = b_packed.at[0, :n_hidden].set(b1.reshape(-1))
    b_packed = b_packed.at[1, :n_hidden].set(b2.reshape(-1))
    b_packed = b_packed.at[2, :n_actions].set(b3.reshape(-1))
    return w1, w2, w3, b_packed


@jax.jit
def critic_forward(x, packed_params):
    w1, w2, w3, b_packed = packed_params
    batch = x.shape[0]
    n_actions = w3.shape[1]

    vmem_spec = pl.BlockSpec(memory_space=pltpu.MemorySpace.VMEM)

    return pl.pallas_call(
        critic_kernel,
        out_shape=jax.ShapeDtypeStruct((batch, n_actions), jnp.float32),
        in_specs=[vmem_spec] * 5,
        out_specs=vmem_spec,
    )(x, w1, w2, w3, b_packed)


def init_critic_params(key, n_states, n_actions, n_hidden):
    """Deterministic init mirroring PyTorch nn.Linear (uniform +/- 1/sqrt(fan_in))."""
    def linear(key, fan_in, fan_out):
        kw, kb = jax.random.split(key)
        bound = 1.0 / jnp.sqrt(float(fan_in))
        w = jax.random.uniform(kw, (fan_in, fan_out), jnp.float32, -bound, bound)
        b = jax.random.uniform(kb, (1, fan_out), jnp.float32, -bound, bound)
        return w, b

    k1, k2, k3 = jax.random.split(key, 3)
    w1, b1 = linear(k1, n_states, n_hidden)
    w2, b2 = linear(k2, n_hidden, n_hidden)
    w3, b3 = linear(k3, n_hidden, n_actions)
    return (w1, b1, w2, b2, w3, b3)


def critic_reference(x, params):
    """Pure-JAX reference for correctness check."""
    w1, b1, w2, b2, w3, b3 = params
    h = jax.nn.relu(x @ w1 + b1)
    h = jax.nn.relu(h @ w2 + b2)
    return h @ w3 + b3


# TODO(synk): the Adam optimizer / training-step machinery of the PyTorch
# module is not part of the forward pass and is not implemented here.

if __name__ == "__main__":
    n_states, n_actions, n_hidden = 16, 4, 32
    batch = 8

    key = jax.random.PRNGKey(0)
    kx, kp = jax.random.split(key)
    x = jax.random.normal(kx, (batch, n_states), jnp.float32)
    params = init_critic_params(kp, n_states, n_actions, n_hidden)
    packed = pack_critic_params(params)

    value = critic_forward(x, packed)
    jax.block_until_ready(value)

    value_ref = critic_reference(x, params)
    assert value.shape == (batch, n_actions)
    assert jnp.allclose(value, value_ref, atol=1e-5), "value mismatch"

    print("KERNEL_OK")
</pallas_src>

<mosaic_0001>
module attributes {stable_mosaic.version = 11 : i64} {
  func.func @critic_kernel(%arg0: memref<8x16xf32, #tpu.memory_space<vmem>>, %arg1: memref<16x32xf32, #tpu.memory_space<vmem>>, %arg2: memref<32x32xf32, #tpu.memory_space<vmem>>, %arg3: memref<32x4xf32, #tpu.memory_space<vmem>>, %arg4: memref<3x32xf32, #tpu.memory_space<vmem>>, %arg5: memref<8x4xf32, #tpu.memory_space<vmem>>) attributes {dimension_semantics = [], scalar_prefetch = 0 : i64, scratch_operands = 0 : i64, tpu.core_type = #tpu.core_type<tc>} {
    %c0 = arith.constant 0 : index
    %c0_0 = arith.constant 0 : index
    %0 = vector.load %arg0[%c0, %c0_0] : memref<8x16xf32, #tpu.memory_space<vmem>>, vector<8x16xf32>
    %c0_1 = arith.constant 0 : index
    %c0_2 = arith.constant 0 : index
    %1 = vector.load %arg4[%c0_1, %c0_2] : memref<3x32xf32, #tpu.memory_space<vmem>>, vector<3x32xf32>
    %c0_3 = arith.constant 0 : index
    %c0_4 = arith.constant 0 : index
    %2 = vector.load %arg1[%c0_3, %c0_4] : memref<16x32xf32, #tpu.memory_space<vmem>>, vector<16x32xf32>
    %cst = arith.constant dense<0.000000e+00> : vector<8x32xf32>
    %3 = tpu.matmul %0, %2, %cst {dimension_numbers = #tpu.dot_dimension_numbers<[1], [0], [0], [1], [0, 0, 1, 1], [], []>} : vector<8x16xf32>, vector<16x32xf32>, vector<8x32xf32> -> vector<8x32xf32>
    %4 = vector.extract_strided_slice %1 {offsets = [0, 0], sizes = [1, 32], strides = [1, 1]} : vector<3x32xf32> to vector<1x32xf32>
    %5 = vector.broadcast %4 : vector<1x32xf32> to vector<8x32xf32>
    %6 = arith.addf %3, %5 : vector<8x32xf32>
    %cst_5 = arith.constant 0.000000e+00 : f32
    %7 = vector.broadcast %cst_5 : f32 to vector<8x32xf32>
    %8 = arith.maximumf %6, %7 : vector<8x32xf32>
    %c0_6 = arith.constant 0 : index
    %c0_7 = arith.constant 0 : index
    %9 = vector.load %arg2[%c0_6, %c0_7] : memref<32x32xf32, #tpu.memory_space<vmem>>, vector<32x32xf32>
    %cst_8 = arith.constant dense<0.000000e+00> : vector<8x32xf32>
    %10 = tpu.matmul %8, %9, %cst_8 {dimension_numbers = #tpu.dot_dimension_numbers<[1], [0], [0], [1], [0, 0, 1, 1], [], []>} : vector<8x32xf32>, vector<32x32xf32>, vector<8x32xf32> -> vector<8x32xf32>
    %11 = vector.extract_strided_slice %1 {offsets = [1, 0], sizes = [1, 32], strides = [1, 1]} : vector<3x32xf32> to vector<1x32xf32>
    %12 = vector.broadcast %11 : vector<1x32xf32> to vector<8x32xf32>
    %13 = arith.addf %10, %12 : vector<8x32xf32>
    %cst_9 = arith.constant 0.000000e+00 : f32
    %14 = vector.broadcast %cst_9 : f32 to vector<8x32xf32>
    %15 = arith.maximumf %13, %14 : vector<8x32xf32>
    %c0_10 = arith.constant 0 : index
    %c0_11 = arith.constant 0 : index
    %16 = vector.load %arg3[%c0_10, %c0_11] : memref<32x4xf32, #tpu.memory_space<vmem>>, vector<32x4xf32>
    %cst_12 = arith.constant dense<0.000000e+00> : vector<8x4xf32>
    %17 = tpu.matmul %15, %16, %cst_12 {dimension_numbers = #tpu.dot_dimension_numbers<[1], [0], [0], [1], [0, 0, 1, 1], [], []>} : vector<8x32xf32>, vector<32x4xf32>, vector<8x4xf32> -> vector<8x4xf32>
    %18 = vector.extract_strided_slice %1 {offsets = [2, 0], sizes = [1, 4], strides = [1, 1]} : vector<3x32xf32> to vector<1x4xf32>
    %19 = vector.broadcast %18 : vector<1x4xf32> to vector<8x4xf32>
    %20 = arith.addf %17, %19 : vector<8x4xf32>
    %c0_13 = arith.constant 0 : index
    %c0_14 = arith.constant 0 : index
    %21 = vector.load %arg5[%c0_13, %c0_14] : memref<8x4xf32, #tpu.memory_space<vmem>>, vector<8x4xf32>
    tpu.vector_store %arg5[%c0_13, %c0_14], %20 {strides = array<i32>} : memref<8x4xf32, #tpu.memory_space<vmem>>, vector<8x4xf32>,
    return
  }
}

</mosaic_0001>

<llo_original>
// kernel: critic_forward.1
$region0: #{critic_forward.1}
  #allocation0 [shape = 'u32[]', space=smem, size = 0x4, offset = 0x4, fixed_abs, tag = 'smem constant byte address 0x4 - core index']
  #allocation1 [shape = 'u32[144,128]{1,0:T(1,128)}', space=vmem, size = 0x12000, scoped, tag = 'internal scratch']
  %s0 = inlined_call_operand.hbm [shape: f32[8,16], index: 0, kind: input, shape index: {}]
  %s1 = inlined_call_operand.hbm [shape: f32[16,32], index: 1, kind: input, shape index: {}]
  %s2 = inlined_call_operand.vmem [shape: f32[32,32], index: 2, kind: input, shape index: {}]
  %s3 = inlined_call_operand.vmem [shape: f32[32,4], index: 3, kind: input, shape index: {}]
  %s4 = inlined_call_operand.vmem [shape: f32[3,32], index: 4, kind: input, shape index: {}]
  %s5 = inlined_call_operand.vmem [shape: f32[8,4], index: 5, kind: output, shape index: {}]
  %s6 = sld [smem:[#allocation0]]
  $region38: #{critic_forward.1} parent=0
    _
  %s8 = ssub.s32 1, %s6
  %s9 = scalar_select 0, %s8, %s6
  $region1: #{critic_forward.1} parent=0
    #allocation2 [shape = 'u8[4096]{0}', space=vmem, size = 0x1000, scoped, tag = 'input window, operand 0, single buffered']
    #allocation3 [shape = 's32[1]{0}', space=sflag, size = 0x4, scoped, tag = 'scoped memory for critic_forward.1']
    #allocation4 [shape = 'u8[8192]{0}', space=vmem, size = 0x2000, scoped, tag = 'input window, operand 1, single buffered']
    #allocation5 [shape = 's32[1]{0}', space=sflag, size = 0x4, scoped, tag = 'scoped memory for critic_forward.1']
    %10 = vsyncpa [#allocation3], 0
    %11 = vsyncpa [#allocation5], 0
    // Predicated region
    $region2: #{critic_forward.1} parent=1 // pred_check
      _
    $region3: #{critic_forward.1} parent=1 // pred_check_branch
      %13 = sbr.rel (0) target = $region5
    $region4: #{critic_forward.1} parent=1 // pred_region
      %s15 = ssub.s32 128, 128
      %16 = vsyncadd [#allocation3], %s15
      %s18 = sshll.u32 [#allocation2], 4
      %s19 = int_to_ptr.vmem [resolvable:$true] %s18
      %21 = dma.hbm_to_vmem [thread:$0]  %s0, 128, %s19, [#allocation3]
    $region5: #{critic_forward.1} parent=1 // pred_fallthru
      _
    // Predicated region
    $region6: #{critic_forward.1} parent=1 // pred_check
      _
    $region7: #{critic_forward.1} parent=1 // pred_check_branch
      %23 = sbr.rel (0) target = $region9
    $region8: #{critic_forward.1} parent=1 // pred_region
      %s25 = ssub.s32 256, 256
      %26 = vsyncadd [#allocation5], %s25
      %s27 = sshll.u32 [#allocation4], 4
      %s28 = int_to_ptr.vmem [resolvable:$true] %s27
      %33 = dma.hbm_to_vmem [thread:$0]  %s1, 256, %s28, [#allocation5], 128, 128, 8
    $region9: #{critic_forward.1} parent=1 // pred_fallthru
      _
    // Predicated region
    $region10: #{critic_forward.1} parent=1 // pred_check
      _
    $region11: #{critic_forward.1} parent=1 // pred_check_branch
      %35 = sbr.rel (0) target = $region13
    $region12: #{critic_forward.1} parent=1 // pred_region
      _
    $region13: #{critic_forward.1} parent=1 // pred_fallthru
      _
    // Predicated region
    $region14: #{critic_forward.1} parent=1 // pred_check
      _
    $region15: #{critic_forward.1} parent=1 // pred_check_branch
      %37 = sbr.rel (0) target = $region17
    $region16: #{critic_forward.1} parent=1 // pred_region
      _
    $region17: #{critic_forward.1} parent=1 // pred_fallthru
      _
    // Predicated region
    $region18: #{critic_forward.1} parent=1 // pred_check
      _
    $region19: #{critic_forward.1} parent=1 // pred_check_branch
      %39 = sbr.rel (0) target = $region21
    $region20: #{critic_forward.1} parent=1 // pred_region
      _
    $region21: #{critic_forward.1} parent=1 // pred_fallthru
      _
    // Predicated region
    $region22: #{critic_forward.1} parent=1 // pred_check
      _
    $region23: #{critic_forward.1} parent=1 // pred_check_branch
      %41 = sbr.rel (0) target = $region25
    $region24: #{critic_forward.1} parent=1 // pred_region
      %42 = dma.done [#allocation3], 128
    $region25: #{critic_forward.1} parent=1 // pred_fallthru
      _
    // Predicated region
    $region26: #{critic_forward.1} parent=1 // pred_check
      _
    $region27: #{critic_forward.1} parent=1 // pred_check_branch
      %44 = sbr.rel (0) target = $region29
    $region28: #{critic_forward.1} parent=1 // pred_region
      %45 = dma.done [#allocation5], 256
    $region29: #{critic_forward.1} parent=1 // pred_fallthru
      _
    %v46 = vld [vmem:[#allocation2] sm:$0xff]
    %v47 = vld [vmem:[%s4] sm:$0x7]
    %v48 = vld [vmem:[#allocation4] sm:$0xff]
    %v49 = vld [vmem:[#allocation4 + $0x8] sm:$0xff]
    %v50 = vlaneseq
    %v51 = vshrl.u32 %v50, 7
    %v52 = vsub.s32 0, %v51
    %v53 = vrot.slane %v47, %v52
    %vm54 = vcmask 130048
    %v56 = vsel %vm54, %v46, 0
    %58 = vmatprep.subr.mxu0 0.0
    %59 = vmatpush1.msra.mxu0 0.0
    %60 = vmatprep.subr.mxu0 0.0
    %61 = vmatpush1.msra.mxu0 0.0
    %62 = vmatprep.subr.mxu0 0.0
    %63 = vmatpush1.msra.mxu0 0.0
    %64 = vmatprep.subr.mxu0 0.0
    %65 = vmatpush1.msra.mxu0 0.0
    %66 = vmatprep.subr.mxu0 0.0
    %67 = vmatpush1.msra.mxu0 0.0
    %68 = vmatprep.subr.mxu0 0.0
    %69 = vmatpush1.msra.mxu0 0.0
    %70 = vmatprep.subr.mxu0 0.0
    %71 = vmatpush1.msra.mxu0 0.0
    %72 = vmatprep.subr.mxu0 0.0
    %73 = vmatpush1.msra.mxu0 0.0
    %74 = vmatprep.subr.mxu0 0.0
    %75 = vmatpush1.msra.mxu0 0.0
    %76 = vmatprep.subr.mxu0 0.0
    %77 = vmatpush1.msra.mxu0 0.0
    %78 = vmatprep.subr.mxu0 0.0
    %79 = vmatpush1.msra.mxu0 0.0
    %80 = vmatprep.subr.mxu0 0.0
    %81 = vmatpush1.msra.mxu0 0.0
    %82 = vmatprep.subr.mxu0 0.0
    %83 = vmatpush1.msra.mxu0 0.0
    %84 = vmatprep.subr.mxu0 0.0
    %85 = vmatpush1.msra.mxu0 0.0
    %86 = vmatprep.subr.mxu0 0.0
    %87 = vmatpush1.msra.mxu0 %v49
    %88 = vmatprep.subr.mxu0 0.0
    %89 = vmatpush1.msra.mxu0 %v48
    %90 = vmatprep.subr.mxu0 0.0
    %91 = vmatpush2.msra.mxu0 0.0
    %92 = vmatprep.subr.mxu0 0.0
    %93 = vmatpush2.msra.mxu0 0.0
    %94 = vmatprep.subr.mxu0 0.0
    %95 = vmatpush2.msra.mxu0 0.0
    %96 = vmatprep.subr.mxu0 0.0
    %97 = vmatpush2.msra.mxu0 0.0
    %98 = vmatprep.subr.mxu0 0.0
    %99 = vmatpush2.msra.mxu0 0.0
    %100 = vmatprep.subr.mxu0 0.0
    %101 = vmatpush2.msra.mxu0 0.0
    %102 = vmatprep.subr.mxu0 0.0
    %103 = vmatpush2.msra.mxu0 0.0
    %104 = vmatprep.subr.mxu0 0.0
    %105 = vmatpush2.msra.mxu0 0.0
    %106 = vmatprep.subr.mxu0 0.0
    %107 = vmatpush2.msra.mxu0 0.0
    %108 = vmatprep.subr.mxu0 0.0
    %109 = vmatpush2.msra.mxu0 0.0
    %110 = vmatprep.subr.mxu0 0.0
    %111 = vmatpush2.msra.mxu0 0.0
    %112 = vmatprep.subr.mxu0 0.0
    %113 = vmatpush2.msra.mxu0 0.0
    %114 = vmatprep.subr.mxu0 0.0
    %115 = vmatpush2.msra.mxu0 0.0
    %116 = vmatprep.subr.mxu0 0.0
    %117 = vmatpush2.msra.mxu0 0.0
    %118 = vmatprep.subr.mxu0 0.0
    %119 = vmatpush2.msra.mxu0 0.0
    %120 = vmatprep.subr.mxu0 0.0
    %121 = vmatpush2.msra.mxu0 0.0
    %122 = vmatprep.mubr.f32.mxu0 0.0
    %123 = vmatmul.mubr.f32.gmra.mxu0 %v56
    %v124 = vpop.f32.mrf.mxu0
    %v125 = vadd.f32 %v53, %v124
    %v126 = vpop.f32.mrf.mxu0
    %127 = vdwg.mxu0
    %v128 = vmax.f32 %v125, 0.0
    %v129 = vld [vmem:[%s2] sm:$0xff]
    %v130 = vld [vmem:[%s2 + $0x8] sm:$0xff]
    %v131 = vld [vmem:[%s2 + $0x10] sm:$0xff]
    %v132 = vld [vmem:[%s2 + $0x18] sm:$0xff]
    %v133 = vlaneseq
    %v134 = vshrl.u32 %v133, 7
    %v135 = vsub.s32 1, %v134
    %v136 = vrot.slane %v47, %v135
    %vm137 = vcmask 261120
    %v139 = vsel %vm137, %v128, 0
    %141 = vmatprep.subr.mxu0 0.0
    %142 = vmatpush1.msra.mxu0 0.0
    %143 = vmatprep.subr.mxu0 0.0
    %144 = vmatpush1.msra.mxu0 0.0
    %145 = vmatprep.subr.mxu0 0.0
    %146 = vmatpush1.msra.mxu0 0.0
    %147 = vmatprep.subr.mxu0 0.0
    %148 = vmatpush1.msra.mxu0 0.0
    %149 = vmatprep.subr.mxu0 0.0
    %150 = vmatpush1.msra.mxu0 0.0
    %151 = vmatprep.subr.mxu0 0.0
    %152 = vmatpush1.msra.mxu0 0.0
    %153 = vmatprep.subr.mxu0 0.0
    %154 = vmatpush1.msra.mxu0 0.0
    %155 = vmatprep.subr.mxu0 0.0
    %156 = vmatpush1.msra.mxu0 0.0
    %157 = vmatprep.subr.mxu0 0.0
    %158 = vmatpush1.msra.mxu0 0.0
    %159 = vmatprep.subr.mxu0 0.0
    %160 = vmatpush1.msra.mxu0 0.0
    %161 = vmatprep.subr.mxu0 0.0
    %162 = vmatpush1.msra.mxu0 0.0
    %163 = vmatprep.subr.mxu0 0.0
    %164 = vmatpush1.msra.mxu0 0.0
    %165 = vmatprep.subr.mxu0 0.0
    %166 = vmatpush1.msra.mxu0 %v132
    %167 = vmatprep.subr.mxu0 0.0
    %168 = vmatpush1.msra.mxu0 %v131
    %169 = vmatprep.subr.mxu0 0.0
    %170 = vmatpush1.msra.mxu0 %v130
    %171 = vmatprep.subr.mxu0 0.0
    %172 = vmatpush1.msra.mxu0 %v129
    %173 = vmatprep.subr.mxu0 0.0
    %174 = vmatpush2.msra.mxu0 0.0
    %175 = vmatprep.subr.mxu0 0.0
    %176 = vmatpush2.msra.mxu0 0.0
    %177 = vmatprep.subr.mxu0 0.0
    %178 = vmatpush2.msra.mxu0 0.0
    %179 = vmatprep.subr.mxu0 0.0
    %180 = vmatpush2.msra.mxu0 0.0
    %181 = vmatprep.subr.mxu0 0.0
    %182 = vmatpush2.msra.mxu0 0.0
    %183 = vmatprep.subr.mxu0 0.0
    %184 = vmatpush2.msra.mxu0 0.0
    %185 = vmatprep.subr.mxu0 0.0
    %186 = vmatpush2.msra.mxu0 0.0
    %187 = vmatprep.subr.mxu0 0.0
    %188 = vmatpush2.msra.mxu0 0.0
    %189 = vmatprep.subr.mxu0 0.0
    %190 = vmatpush2.msra.mxu0 0.0
    %191 = vmatprep.subr.mxu0 0.0
    %192 = vmatpush2.msra.mxu0 0.0
    %193 = vmatprep.subr.mxu0 0.0
    %194 = vmatpush2.msra.mxu0 0.0
    %195 = vmatprep.subr.mxu0 0.0
    %196 = vmatpush2.msra.mxu0 0.0
    %197 = vmatprep.subr.mxu0 0.0
    %198 = vmatpush2.msra.mxu0 0.0
    %199 = vmatprep.subr.mxu0 0.0
    %200 = vmatpush2.msra.mxu0 0.0
    %201 = vmatprep.subr.mxu0 0.0
    %202 = vmatpush2.msra.mxu0 0.0
    %203 = vmatprep.subr.mxu0 0.0
    %204 = vmatpush2.msra.mxu0 0.0
    %205 = vmatprep.mubr.f32.mxu0 0.0
    %206 = vmatmul.mubr.f32.gmra.mxu0 %v139
    %v207 = vpop.f32.mrf.mxu0
    %v208 = vadd.f32 %v136, %v207
    %v209 = vpop.f32.mrf.mxu0
    %210 = vdwg.mxu0
    %v211 = vmax.f32 %v208, 0.0
    %v212 = vld [vmem:[%s3] sm:$0xff]
    %v213 = vld [vmem:[%s3 + $0x8] sm:$0xff]
    %v214 = vld [vmem:[%s3 + $0x10] sm:$0xff]
    %v215 = vld [vmem:[%s3 + $0x18] sm:$0xff]
    %v216 = vlaneseq
    %v217 = vshrl.u32 %v216, 7
    %v218 = vsub.s32 2, %v217
    %v219 = vrot.slane %v47, %v218
    %v221 = vsel %vm137, %v211, 0
    %223 = vmatprep.subr.mxu0 0.0
    %224 = vmatpush1.msra.mxu0 0.0
    %225 = vmatprep.subr.mxu0 0.0
    %226 = vmatpush1.msra.mxu0 0.0
    %227 = vmatprep.subr.mxu0 0.0
    %228 = vmatpush1.msra.mxu0 0.0
    %229 = vmatprep.subr.mxu0 0.0
    %230 = vmatpush1.msra.mxu0 0.0
    %231 = vmatprep.subr.mxu0 0.0
    %232 = vmatpush1.msra.mxu0 0.0
    %233 = vmatprep.subr.mxu0 0.0
    %234 = vmatpush1.msra.mxu0 0.0
    %235 = vmatprep.subr.mxu0 0.0
    %236 = vmatpush1.msra.mxu0 0.0
    %237 = vmatprep.subr.mxu0 0.0
    %238 = vmatpush1.msra.mxu0 0.0
    %239 = vmatprep.subr.mxu0 0.0
    %240 = vmatpush1.msra.mxu0 0.0
    %241 = vmatprep.subr.mxu0 0.0
    %242 = vmatpush1.msra.mxu0 0.0
    %243 = vmatprep.subr.mxu0 0.0
    %244 = vmatpush1.msra.mxu0 0.0
    %245 = vmatprep.subr.mxu0 0.0
    %246 = vmatpush1.msra.mxu0 0.0
    %247 = vmatprep.subr.mxu0 0.0
    %248 = vmatpush1.msra.mxu0 %v215
    %249 = vmatprep.subr.mxu0 0.0
    %250 = vmatpush1.msra.mxu0 %v214
    %251 = vmatprep.subr.mxu0 0.0
    %252 = vmatpush1.msra.mxu0 %v213
    %253 = vmatprep.subr.mxu0 0.0
    %254 = vmatpush1.msra.mxu0 %v212
    %255 = vmatprep.subr.mxu0 0.0
    %256 = vmatpush2.msra.mxu0 0.0
    %257 = vmatprep.subr.mxu0 0.0
    %258 = vmatpush2.msra.mxu0 0.0
    %259 = vmatprep.subr.mxu0 0.0
    %260 = vmatpush2.msra.mxu0 0.0
    %261 = vmatprep.subr.mxu0 0.0
    %262 = vmatpush2.msra.mxu0 0.0
    %263 = vmatprep.subr.mxu0 0.0
    %264 = vmatpush2.msra.mxu0 0.0
    %265 = vmatprep.subr.mxu0 0.0
    %266 = vmatpush2.msra.mxu0 0.0
    %267 = vmatprep.subr.mxu0 0.0
    %268 = vmatpush2.msra.mxu0 0.0
    %269 = vmatprep.subr.mxu0 0.0
    %270 = vmatpush2.msra.mxu0 0.0
    %271 = vmatprep.subr.mxu0 0.0
    %272 = vmatpush2.msra.mxu0 0.0
    %273 = vmatprep.subr.mxu0 0.0
    %274 = vmatpush2.msra.mxu0 0.0
    %275 = vmatprep.subr.mxu0 0.0
    %276 = vmatpush2.msra.mxu0 0.0
    %277 = vmatprep.subr.mxu0 0.0
    %278 = vmatpush2.msra.mxu0 0.0
    %279 = vmatprep.subr.mxu0 0.0
    %280 = vmatpush2.msra.mxu0 0.0
    %281 = vmatprep.subr.mxu0 0.0
    %282 = vmatpush2.msra.mxu0 0.0
    %283 = vmatprep.subr.mxu0 0.0
    %284 = vmatpush2.msra.mxu0 0.0
    %285 = vmatprep.subr.mxu0 0.0
    %286 = vmatpush2.msra.mxu0 0.0
    %287 = vmatprep.mubr.f32.mxu0 0.0
    %288 = vmatmul.mubr.f32.gmra.mxu0 %v221
    %v289 = vpop.f32.mrf.mxu0
    %v290 = vadd.f32 %v219, %v289
    %v291 = vpop.f32.mrf.mxu0
    %292 = vdwg.mxu0
    %vm293 = vcmask 31744
    %294 = vst.msk [vmem:[%s5] sm:$0xff] %vm293, %v290
    // Predicated region
    $region30: #{critic_forward.1} parent=1 // pred_check
      _
    $region31: #{critic_forward.1} parent=1 // pred_check_branch
      %296 = sbr.rel (0) target = $region33
    $region32: #{critic_forward.1} parent=1 // pred_region
      _
    $region33: #{critic_forward.1} parent=1 // pred_fallthru
      _
    // Predicated region
    $region34: #{critic_forward.1} parent=1 // pred_check
      _
    $region35: #{critic_forward.1} parent=1 // pred_check_branch
      %298 = sbr.rel (0) target = $region37
    $region36: #{critic_forward.1} parent=1 // pred_region
      _
    $region37: #{critic_forward.1} parent=1 // pred_fallthru
      _
    %299 = vsyncpa [#allocation3], 1
    %300 = vsyncpa [#allocation5], 1

</llo_original>
